<compile_context>
chip_gen: v7x
topology: tpu7x:2x2x1
jax: 0.10.0
libtpu: 0.0.40
codegen_flags: <defaults>
</compile_context>

<pallas_src>
import jax
import jax.numpy as jnp
from jax.experimental import pallas as pl
from jax.experimental.pallas import tpu as pltpu

_LANE = 128                  # vreg lane width
_TILE_BYTES = 8 << 20        # ~8 MiB per tile buffer (v7x-friendly; fine on v5e/v6e)
_SPLIT_BYTES = 2 << 20       # above this, force >= 2 grid steps (v7x megacore)
_TINY_ELEMS = 64 * 1024      # below this, a fused XLA add beats a kernel launch

_RAGGED_PALLAS_OK = True     # flipped off once if the flat 1-D path fails to lower


def _min_sublane(dtype) -> int:
    # Native sublane packing: f32 -> 8, bf16 -> 16, int8/fp8 -> 32.
    return max(8, 32 // jnp.dtype(dtype).itemsize)


def _round_up(x: int, m: int) -> int:
    return ((x + m - 1) // m) * m


def _add_one_kernel(x_ref, o_ref):
    # Pure streaming VPU add over the whole VMEM tile.  For a partial last
    # block the out-of-bounds region is never written back to HBM.
    o_ref[...] = x_ref[...] + 1


def _stream_add_one(x, block_shape, grid, *, valid_elems, donate=False):
    """Elementwise +1 over `x`, pipelined in `block_shape` tiles along axis 0."""
    itemsize = jnp.dtype(x.dtype).itemsize
    tile_bytes = itemsize
    for d in block_shape:
        tile_bytes *= d
    # 1 input + 1 output, default Buffered(2) pipeline depth each, + headroom.
    vmem_limit = min(max(4 * tile_bytes + (8 << 20), 16 << 20), 48 << 20)
    if len(block_shape) == 1:
        index_map = lambda i: (i,)
    else:
        index_map = lambda i: (i, 0)
    return pl.pallas_call(
        _add_one_kernel,
        out_shape=jax.ShapeDtypeStruct(x.shape, x.dtype),
        grid_spec=pltpu.PrefetchScalarGridSpec(
            num_scalar_prefetch=0,
            grid=grid,
            in_specs=[pl.BlockSpec(block_shape, index_map)],
            out_specs=pl.BlockSpec(block_shape, index_map),
        ),
        compiler_params=pltpu.CompilerParams(
            # Independent steps: shards the grid across v7x's two TensorCores.
            dimension_semantics=("parallel",),
            vmem_limit_bytes=vmem_limit,
        ),
        cost_estimate=pl.CostEstimate(
            flops=valid_elems, transcendentals=0,
            bytes_accessed=2 * valid_elems * itemsize),
        input_output_aliases=({0: 0} if donate else {}),
    )(x)


def yukai_forward(x, *, donate=False) -> jax.Array:
    """JAX/Pallas equivalent of YuKai().forward(x): returns x + 1."""
    global _RAGGED_PALLAS_OK
    x = jnp.asarray(x)
    n = x.size

    # Fast path: scalars (the module's stated use), tiny arrays, and bool
    # (dtype-promotion edge case) -> plain fused XLA add.  Same roofline,
    # no launch / reshape plumbing.
    if x.ndim == 0 or n < _TINY_ELEMS or x.dtype == jnp.bool_:
        return x + 1

    itemsize = jnp.dtype(x.dtype).itemsize
    sub = _min_sublane(x.dtype)
    total_bytes = n * itemsize
    max_tile_rows = max(sub, (_TILE_BYTES // (_LANE * itemsize)) // sub * sub)

    if n % _LANE == 0:
        # Lane-aligned path: zero-copy (rows, 128) slab, cdiv grid; Pallas
        # handles a partial last row-block, so no padding and no slicing.
        rows = n // _LANE
        tile_rows = max_tile_rows
        if total_bytes > _SPLIT_BYTES:
            # Guarantee >= 2 grid steps so both v7x TensorCores stream.
            tile_rows = min(tile_rows, _round_up(-(-rows // 2), sub))
        tile_rows = min(tile_rows, _round_up(rows, sub))
        grid = (pl.cdiv(rows, tile_rows),)
        out2d = _stream_add_one(x.reshape(rows, _LANE), (tile_rows, _LANE),
                                grid, valid_elems=n, donate=donate)
        return out2d.reshape(x.shape)

    # Lane-ragged path (n % 128 != 0): stream the flat 1-D array directly and
    # let Pallas mask the partial last block.  No pad / trailing-slice round
    # trip, so HBM traffic stays at one read + one write pass.
    if _RAGGED_PALLAS_OK:
        flat = x.reshape(-1)
        chunk = sub * _LANE                          # keep blocks 128-aligned
        tile_elems = max_tile_rows * _LANE
        if total_bytes > _SPLIT_BYTES:
            tile_elems = min(tile_elems, _round_up(-(-n // 2), chunk))
        if tile_elems >= n:
            tile_elems = n                           # single full-extent block
        grid = (pl.cdiv(n, tile_elems),)
        try:
            out_flat = _stream_add_one(flat, (tile_elems,), grid,
                                       valid_elems=n, donate=donate)
            return out_flat.reshape(x.shape)
        except Exception:
            # Backend without rank-1 / partial-lane-block support: degrade to
            # the fused XLA add below (still a single-pass roofline op).
            # Only catches eager calls; under an outer jit the Pallas path is
            # used unconditionally.
            _RAGGED_PALLAS_OK = False
    return x + 1


if __name__ == "__main__":
    # Scalar usage from the PyTorch spec: x = torch.tensor(1.0); YuKai()(x) == 2.0
    x_scalar = jnp.asarray(1.0, dtype=jnp.float32)
    out_scalar = jax.block_until_ready(yukai_forward(x_scalar))
    assert out_scalar.shape == ()
    assert abs(float(out_scalar) - 2.0) < 1e-6, f"expected 2.0, got {float(out_scalar)}"

    # Small tensor: tiny fast path (fused XLA add).
    x_small = jax.random.normal(jax.random.PRNGKey(0), (2, 4, 16, 16), jnp.float32)
    out_small = jax.block_until_ready(yukai_forward(x_small))
    assert out_small.shape == x_small.shape
    assert jnp.allclose(out_small, x_small + 1.0, atol=1e-6)

    # Lane-ragged shape: flat 1-D kernel path (zero-copy, no pad / slice).
    x_ragged = jax.random.normal(jax.random.PRNGKey(1), (3, 1000, 37), jnp.float32)
    out_ragged = jax.block_until_ready(yukai_forward(x_ragged))
    assert jnp.allclose(out_ragged, x_ragged + 1.0, atol=1e-6)

    # Aligned but not a multiple of the tile: previously hit pad + slice, now
    # zero-copy with a partial last row-block on a 2-step parallel grid.
    x_odd = jax.random.normal(jax.random.PRNGKey(4), (5, 999, 128), jnp.float32)
    out_odd = jax.block_until_ready(yukai_forward(x_odd))
    assert jnp.allclose(out_odd, x_odd + 1.0, atol=1e-6)

    # Larger aligned f32 input: zero-copy (rows, 128) slab, 2 x 8 MiB steps.
    x_big = jax.random.normal(jax.random.PRNGKey(2), (64, 512, 128), jnp.float32)
    out_big = jax.block_until_ready(yukai_forward(x_big))
    assert jnp.allclose(out_big, x_big + 1.0, atol=1e-6)

    # bf16 input: 16-row sublane packing, multi-step grid.
    x_bf16 = jax.random.normal(jax.random.PRNGKey(3), (128, 128, 128), jnp.bfloat16)
    out_bf16 = jax.block_until_ready(yukai_forward(x_bf16))
    assert jnp.allclose(out_bf16.astype(jnp.float32),
                        (x_bf16 + 1).astype(jnp.float32), atol=1e-2)

    print("KERNEL_OK")
</pallas_src>

<mosaic_0001>
module attributes {stable_mosaic.version = 11 : i64} {
  func.func @_add_one_kernel(%arg0: i32, %arg1: memref<2504x128xf32, #tpu.memory_space<vmem>>, %arg2: memref<2504x128xf32, #tpu.memory_space<vmem>>) attributes {dimension_semantics = [#tpu.dimension_semantics<parallel>], iteration_bounds = array<i64: 2>, scalar_prefetch = 0 : i64, scratch_operands = 0 : i64, tpu.core_type = #tpu.core_type<tc>, window_params = [{transform_indices = @transform_0, window_bounds = array<i64: 2504, 128>}, {transform_indices = @transform_1, window_bounds = array<i64: 2504, 128>}]} {
    %c0 = arith.constant 0 : index
    %c0_0 = arith.constant 0 : index
    %0 = vector.load %arg1[%c0, %c0_0] : memref<2504x128xf32, #tpu.memory_space<vmem>>, vector<2504x128xf32>
    %cst = arith.constant 1.000000e+00 : f32
    %1 = vector.broadcast %cst : f32 to vector<2504x128xf32>
    %2 = arith.addf %0, %1 : vector<2504x128xf32>
    %c0_1 = arith.constant 0 : index
    %c0_2 = arith.constant 0 : index
    %3 = vector.load %arg2[%c0_1, %c0_2] : memref<2504x128xf32, #tpu.memory_space<vmem>>, vector<2504x128xf32>
    tpu.vector_store %arg2[%c0_1, %c0_2], %2 {strides = array<i32>} : memref<2504x128xf32, #tpu.memory_space<vmem>>, vector<2504x128xf32>,
    return
  }
  func.func @transform_0(%arg0: i32) -> (i32, i32) {
    %c0_i32 = arith.constant 0 : i32
    %c0_i32_0 = arith.constant 0 : i32
    return %arg0, %c0_i32 : i32, i32
  }
  func.func @transform_1(%arg0: i32) -> (i32, i32) {
    %c0_i32 = arith.constant 0 : i32
    %c0_i32_0 = arith.constant 0 : i32
    return %arg0, %c0_i32 : i32, i32
  }
}

</mosaic_0001>

<llo_original>
// kernel: tpu_custom_call.1
$region0: #{tpu_custom_call.1}
  #allocation0 [shape = 'u32[]', space=smem, size = 0x4, offset = 0x4, fixed_abs, tag = 'smem constant byte address 0x4 - core index']
  #allocation1 [shape = 'u32[144,128]{1,0:T(1,128)}', space=vmem, size = 0x12000, scoped, tag = 'internal scratch']
  %s0 = inlined_call_operand.hbm [shape: f32[4995,128], index: 0, kind: input, shape index: {}]
  %s1 = inlined_call_operand.hbm [shape: f32[4995,128], index: 1, kind: output, shape index: {}]
  %s2 = sld [smem:[#allocation0]]
  $region41: #{tpu_custom_call.1} parent=0
    _
  %s4 = ssub.s32 1, %s2
  %s5 = scalar_select 0, %s4, %s2
  $region1: #{tpu_custom_call.1} parent=0
    #allocation2 [shape = 'u8[2564096]{0}', space=vmem, size = 0x272000, scoped, tag = 'input window, operand 0']
    #allocation3 [shape = 's32[2]{0}', space=sflag, size = 0x8, scoped, tag = 'scoped memory for tpu_custom_call.1']
    #allocation4 [shape = 's32[2]{0}', space=sflag, size = 0x8, scoped, tag = 'scoped memory for tpu_custom_call.1']
    #allocation5 [shape = 'u8[2564096]{0}', space=vmem, size = 0x272000, scoped, tag = 'output window, operand 0']
    %6 = vsyncpa [#allocation3], 0
    %s7 = scalar_lea.sflag [#allocation3], 1
    %8 = vsyncpa %s7, 0
    %9 = vsyncpa [#allocation4], 0
    %s10 = scalar_lea.sflag [#allocation4], 1
    %11 = vsyncpa %s10, 0
    loop: start=0, step=1, limit=4
    $region2: #{tpu_custom_call.1} parent=1 // loop_pre_header
      _
    $region3: #{tpu_custom_call.1} parent=1 // loop_header
      %s13 = sphi 0, %s17
      %p14 = scmp.ge.s32.totalorder %s13, 4
      %s23 = sphi 0, %s25
      %s26 = sphi 0, %s23
      %s27 = sphi 0, %s26
      %s43 = sphi 0, %s27
      %s49 = sphi 0, %s51
      %s52 = sphi 0, %s49
      %s53 = sphi 0, %s52
      %s69 = sphi 0, %s53
    $region4: #{tpu_custom_call.1} parent=1 // loop_header_branch
      %16 = sbr.rel (%p14) target = $region8
    $region5: #{tpu_custom_call.1} parent=1 // loop_body
      %s18 = ssub.s32 %s13, 1
      %s19 = ssub.s32 %s13, 2
      %s20 = sadd.s32 %s13, 1
      %s21 = ssub.s32 %s13, %s20
      %p22 = scmp.eq.s32.totalorder %s21, 0
      %s24 = sadd.s32 %s23, 1
      %s25 = scalar_select %p22, %s23, %s24
      %p28 = pneg %p22
      %p29 = scmp.eq.s32.totalorder %s13, 1
      %p30 = por %p28, %p29
      %p31 = scmp.ne.s32.totalorder %s23, %s26
      %p32 = scmp.eq.s32.totalorder %s13, 0
      %p33 = por %p31, %p32
      %p34 = scmp.ne.s32.totalorder %s23, %s26
      %p35 = scmp.eq.s32.totalorder %s18, 1
      %p36 = por %p34, %p35
      %p37 = scmp.ne.s32.totalorder %s26, %s27
      %p38 = scmp.eq.s32.totalorder %s18, 0
      %p39 = por %p37, %p38
      %p40 = scmp.ne.s32.totalorder %s26, %s27
      %p41 = scmp.eq.s32.totalorder %s19, 1
      %p42 = por %p40, %p41
      %p44 = scmp.ne.s32.totalorder %s27, %s43
      %p45 = scmp.eq.s32.totalorder %s19, 0
      %p46 = por %p44, %p45
      %s47 = ssub.s32 %s13, %s20
      %p48 = scmp.eq.s32.totalorder %s47, 0
      %s50 = sadd.s32 %s49, 1
      %s51 = scalar_select %p48, %s49, %s50
      %p54 = pneg %p48
      %p55 = scmp.eq.s32.totalorder %s13, 1
      %p56 = por %p54, %p55
      %p57 = scmp.ne.s32.totalorder %s49, %s52
      %p58 = scmp.eq.s32.totalorder %s13, 0
      %p59 = por %p57, %p58
      %p60 = scmp.ne.s32.totalorder %s49, %s52
      %p61 = scmp.eq.s32.totalorder %s18, 1
      %p62 = por %p60, %p61
      %p63 = scmp.ne.s32.totalorder %s52, %s53
      %p64 = scmp.eq.s32.totalorder %s18, 0
      %p65 = por %p63, %p64
      %p66 = scmp.ne.s32.totalorder %s52, %s53
      %p67 = scmp.eq.s32.totalorder %s19, 1
      %p68 = por %p66, %p67
      %p70 = scmp.ne.s32.totalorder %s53, %s69
      %p71 = scmp.eq.s32.totalorder %s19, 0
      %p72 = por %p70, %p71
      %p73 = scmp.le.s32.totalorder 1, %s13
      %p74 = scmp.lt.s32.totalorder %s13, 3
      %p75 = pnand %p73, %p74
      %p76 = pneg %p75
      // Predicated region
      $region9: #{tpu_custom_call.1} parent=5 // pred_check
        _
      $region10: #{tpu_custom_call.1} parent=5 // pred_check_branch
        %78 = sbr.rel (%p75) target = $region12
      $region11: #{tpu_custom_call.1} parent=5 // pred_region
        %s79 = ssub.s32 %s13, 1
      $region12: #{tpu_custom_call.1} parent=5 // pred_fallthru
        _
      %p80 = scmp.lt.s32.totalorder %s13, 2
      // Predicated region
      $region13: #{tpu_custom_call.1} parent=5 // pred_check
        %p81 = pneg %p80
      $region14: #{tpu_custom_call.1} parent=5 // pred_check_branch
        %83 = sbr.rel (%p81) target = $region16
      $region15: #{tpu_custom_call.1} parent=5 // pred_region
        // Predicated region
        $region17: #{tpu_custom_call.1} parent=15 // pred_check
          %p84 = pneg %p33
        $region18: #{tpu_custom_call.1} parent=15 // pred_check_branch
          %86 = sbr.rel (%p84) target = $region20
        $region19: #{tpu_custom_call.1} parent=15 // pred_region
          %s87 = sand.u32 %s23, 1
          %s88 = scalar_lea.sflag [#allocation3], %s87
          %s89 = sand.u32 %s23, 1
          %s90 = smul.addr %s89, 2504
          %s91 = scalar_lea.vmem [#allocation2], %s90
          %s92 = smul.u32 313, %s13
          %s93 = ssub.s32 625, %s92
          %p94 = scmp.lt.s32.totalorder %s93, 313
          %s95 = scalar_select %p94, %s93, 313
          %s96 = smul.u32 128, %s95
          %s98 = ssub.s32 40064, %s96
          %99 = vsyncadd %s88, %s98
          %p100 = scmp.ne.s32.totalorder 0, %s96
          %s101 = smul.addr %s92, 128
          %s102 = scalar_lea.hbm %s0, %s101
          %s103 = smul.u32 8, %s95
          %s104 = sshll.u32 %s91, 4
          %s105 = int_to_ptr.vmem [resolvable:$true] %s104
          %s106 = sshll.u32 %s103, 4
          %110 = dma.hbm_to_vmem [thread:$0]  (%p100), %s102, %s106, %s105, %s88, 128, 128, 8
        $region20: #{tpu_custom_call.1} parent=15 // pred_fallthru
          _
      $region16: #{tpu_custom_call.1} parent=5 // pred_fallthru
        _
      %p111 = scmp.le.s32.totalorder 1, %s13
      %p112 = scmp.lt.s32.totalorder %s13, 3
      %p113 = pnand %p111, %p112
      %p114 = pneg %p113
      // Predicated region
      $region21: #{tpu_custom_call.1} parent=5 // pred_check
        _
      $region22: #{tpu_custom_call.1} parent=5 // pred_check_branch
        %116 = sbr.rel (%p113) target = $region24
      $region23: #{tpu_custom_call.1} parent=5 // pred_region
        %s117 = ssub.s32 %s13, 1
        %s118 = sand.u32 %s26, 1
        %s119 = scalar_lea.sflag [#allocation3], %s118
        %s120 = sand.u32 %s26, 1
        %s121 = smul.addr %s120, 2504
        %s122 = scalar_lea.vmem [#allocation2], %s121
        // Predicated region
        $region25: #{tpu_custom_call.1} parent=23 // pred_check
          %p123 = pneg %p39
        $region26: #{tpu_custom_call.1} parent=23 // pred_check_branch
          %125 = sbr.rel (%p123) target = $region28
        $region27: #{tpu_custom_call.1} parent=23 // pred_region
          %126 = dma.done %s119, 40064
        $region28: #{tpu_custom_call.1} parent=23 // pred_fallthru
          _
        %s127 = sand.u32 %s26, 1
        %s128 = scalar_lea.sflag [#allocation3], %s127
        %s129 = sand.u32 %s26, 1
        %s130 = smul.addr %s129, 2504
        %s131 = scalar_lea.vmem [#allocation2], %s130
        %p132 = pneg %p39
        %p133 = pneg %p36
        %p134 = pneg %p65
        %p135 = pneg %p62
        %s136 = sand.u32 %s52, 1
        %s137 = scalar_lea.sflag [#allocation4], %s136
        %s138 = sand.u32 %s52, 1
        %s139 = smul.addr %s138, 2504
        %s140 = scalar_lea.vmem [#allocation5], %s139
        %s141 = smul.u32 313, %s18
        %s142 = ssub.s32 625, %s141
        %p143 = scmp.lt.s32.totalorder %s142, 313
        %s144 = scalar_select %p143, %s142, 313
        %s145 = smul.u32 128, %s144
        %s146 = smul.u32 313, %s18
        %s147 = ssub.s32 625, %s146
        %p148 = scmp.lt.s32.totalorder %s147, 313
        %s149 = scalar_select %p148, %s147, 313
        %s150 = smul.u32 128, %s149
        %v151 = vld [vmem:[%s122] sm:$0xff]
        %v152 = vld [vmem:[%s122 + $0x8] sm:$0xff]
        %v153 = vld [vmem:[%s122 + $0x10] sm:$0xff]
        %v154 = vld [vmem:[%s122 + $0x18] sm:$0xff]
        %v155 = vld [vmem:[%s122 + $0x20] sm:$0xff]
        %v156 = vld [vmem:[%s122 + $0x28] sm:$0xff]
        %v157 = vld [vmem:[%s122 + $0x30] sm:$0xff]
        %v158 = vld [vmem:[%s122 + $0x38] sm:$0xff]
        %v159 = vld [vmem:[%s122 + $0x40] sm:$0xff]
        %v160 = vld [vmem:[%s122 + $0x48] sm:$0xff]
        %v161 = vld [vmem:[%s122 + $0x50] sm:$0xff]
        %v162 = vld [vmem:[%s122 + $0x58] sm:$0xff]
        %v163 = vld [vmem:[%s122 + $0x60] sm:$0xff]
        %v164 = vld [vmem:[%s122 + $0x68] sm:$0xff]
        %v165 = vld [vmem:[%s122 + $0x70] sm:$0xff]
        %v166 = vld [vmem:[%s122 + $0x78] sm:$0xff]
        %v167 = vld [vmem:[%s122 + $0x80] sm:$0xff]
        %v168 = vld [vmem:[%s122 + $0x88] sm:$0xff]
        %v169 = vld [vmem:[%s122 + $0x90] sm:$0xff]
        %v170 = vld [vmem:[%s122 + $0x98] sm:$0xff]
        %v171 = vld [vmem:[%s122 + $0xa0] sm:$0xff]
        %v172 = vld [vmem:[%s122 + $0xa8] sm:$0xff]
        %v173 = vld [vmem:[%s122 + $0xb0] sm:$0xff]
        %v174 = vld [vmem:[%s122 + $0xb8] sm:$0xff]
        %v175 = vld [vmem:[%s122 + $0xc0] sm:$0xff]
        %v176 = vld [vmem:[%s122 + $0xc8] sm:$0xff]
        %v177 = vld [vmem:[%s122 + $0xd0] sm:$0xff]
        %v178 = vld [vmem:[%s122 + $0xd8] sm:$0xff]
        %v179 = vld [vmem:[%s122 + $0xe0] sm:$0xff]
        %v180 = vld [vmem:[%s122 + $0xe8] sm:$0xff]
        %v181 = vld [vmem:[%s122 + $0xf0] sm:$0xff]
        %v182 = vld [vmem:[%s122 + $0xf8] sm:$0xff]
        %v183 = vld [vmem:[%s122 + $0x100] sm:$0xff]
        %v184 = vld [vmem:[%s122 + $0x108] sm:$0xff]
        %v185 = vld [vmem:[%s122 + $0x110] sm:$0xff]
        %v186 = vld [vmem:[%s122 + $0x118] sm:$0xff]
        %v187 = vld [vmem:[%s122 + $0x120] sm:$0xff]
        %v188 = vld [vmem:[%s122 + $0x128] sm:$0xff]
        %v189 = vld [vmem:[%s122 + $0x130] sm:$0xff]
        %v190 = vld [vmem:[%s122 + $0x138] sm:$0xff]
        %v191 = vld [vmem:[%s122 + $0x140] sm:$0xff]
        %v192 = vld [vmem:[%s122 + $0x148] sm:$0xff]
        %v193 = vld [vmem:[%s122 + $0x150] sm:$0xff]
        %v194 = vld [vmem:[%s122 + $0x158] sm:$0xff]
        %v195 = vld [vmem:[%s122 + $0x160] sm:$0xff]
        %v196 = vld [vmem:[%s122 + $0x168] sm:$0xff]
        %v197 = vld [vmem:[%s122 + $0x170] sm:$0xff]
        %v198 = vld [vmem:[%s122 + $0x178] sm:$0xff]
        %v199 = vld [vmem:[%s122 + $0x180] sm:$0xff]
        %v200 = vld [vmem:[%s122 + $0x188] sm:$0xff]
        %v201 = vld [vmem:[%s122 + $0x190] sm:$0xff]
        %v202 = vld [vmem:[%s122 + $0x198] sm:$0xff]
        %v203 = vld [vmem:[%s122 + $0x1a0] sm:$0xff]
        %v204 = vld [vmem:[%s122 + $0x1a8] sm:$0xff]
        %v205 = vld [vmem:[%s122 + $0x1b0] sm:$0xff]
        %v206 = vld [vmem:[%s122 + $0x1b8] sm:$0xff]
        %v207 = vld [vmem:[%s122 + $0x1c0] sm:$0xff]
        %v208 = vld [vmem:[%s122 + $0x1c8] sm:$0xff]
        %v209 = vld [vmem:[%s122 + $0x1d0] sm:$0xff]
        %v210 = vld [vmem:[%s122 + $0x1d8] sm:$0xff]
        %v211 = vld [vmem:[%s122 + $0x1e0] sm:$0xff]
        %v212 = vld [vmem:[%s122 + $0x1e8] sm:$0xff]
        %v213 = vld [vmem:[%s122 + $0x1f0] sm:$0xff]
        %v214 = vld [vmem:[%s122 + $0x1f8] sm:$0xff]
        %v215 = vld [vmem:[%s122 + $0x200] sm:$0xff]
        %v216 = vld [vmem:[%s122 + $0x208] sm:$0xff]
        %v217 = vld [vmem:[%s122 + $0x210] sm:$0xff]
        %v218 = vld [vmem:[%s122 + $0x218] sm:$0xff]
        %v219 = vld [vmem:[%s122 + $0x220] sm:$0xff]
        %v220 = vld [vmem:[%s122 + $0x228] sm:$0xff]
        %v221 = vld [vmem:[%s122 + $0x230] sm:$0xff]
        %v222 = vld [vmem:[%s122 + $0x238] sm:$0xff]
        %v223 = vld [vmem:[%s122 + $0x240] sm:$0xff]
        %v224 = vld [vmem:[%s122 + $0x248] sm:$0xff]
        %v225 = vld [vmem:[%s122 + $0x250] sm:$0xff]
        %v226 = vld [vmem:[%s122 + $0x258] sm:$0xff]
        %v227 = vld [vmem:[%s122 + $0x260] sm:$0xff]
        %v228 = vld [vmem:[%s122 + $0x268] sm:$0xff]
        %v229 = vld [vmem:[%s122 + $0x270] sm:$0xff]
        %v230 = vld [vmem:[%s122 + $0x278] sm:$0xff]
        %v231 = vld [vmem:[%s122 + $0x280] sm:$0xff]
        %v232 = vld [vmem:[%s122 + $0x288] sm:$0xff]
        %v233 = vld [vmem:[%s122 + $0x290] sm:$0xff]
        %v234 = vld [vmem:[%s122 + $0x298] sm:$0xff]
        %v235 = vld [vmem:[%s122 + $0x2a0] sm:$0xff]
        %v236 = vld [vmem:[%s122 + $0x2a8] sm:$0xff]
        %v237 = vld [vmem:[%s122 + $0x2b0] sm:$0xff]
        %v238 = vld [vmem:[%s122 + $0x2b8] sm:$0xff]
        %v239 = vld [vmem:[%s122 + $0x2c0] sm:$0xff]
        %v240 = vld [vmem:[%s122 + $0x2c8] sm:$0xff]
        %v241 = vld [vmem:[%s122 + $0x2d0] sm:$0xff]
        %v242 = vld [vmem:[%s122 + $0x2d8] sm:$0xff]
        %v243 = vld [vmem:[%s122 + $0x2e0] sm:$0xff]
        %v244 = vld [vmem:[%s122 + $0x2e8] sm:$0xff]
        %v245 = vld [vmem:[%s122 + $0x2f0] sm:$0xff]
        %v246 = vld [vmem:[%s122 + $0x2f8] sm:$0xff]
        %v247 = vld [vmem:[%s122 + $0x300] sm:$0xff]
        %v248 = vld [vmem:[%s122 + $0x308] sm:$0xff]
        %v249 = vld [vmem:[%s122 + $0x310] sm:$0xff]
        %v250 = vld [vmem:[%s122 + $0x318] sm:$0xff]
        %v251 = vld [vmem:[%s122 + $0x320] sm:$0xff]
        %v252 = vld [vmem:[%s122 + $0x328] sm:$0xff]
        %v253 = vld [vmem:[%s122 + $0x330] sm:$0xff]
        %v254 = vld [vmem:[%s122 + $0x338] sm:$0xff]
        %v255 = vld [vmem:[%s122 + $0x340] sm:$0xff]
        %v256 = vld [vmem:[%s122 + $0x348] sm:$0xff]
        %v257 = vld [vmem:[%s122 + $0x350] sm:$0xff]
        %v258 = vld [vmem:[%s122 + $0x358] sm:$0xff]
        %v259 = vld [vmem:[%s122 + $0x360] sm:$0xff]
        %v260 = vld [vmem:[%s122 + $0x368] sm:$0xff]
        %v261 = vld [vmem:[%s122 + $0x370] sm:$0xff]
        %v262 = vld [vmem:[%s122 + $0x378] sm:$0xff]
        %v263 = vld [vmem:[%s122 + $0x380] sm:$0xff]
        %v264 = vld [vmem:[%s122 + $0x388] sm:$0xff]
        %v265 = vld [vmem:[%s122 + $0x390] sm:$0xff]
        %v266 = vld [vmem:[%s122 + $0x398] sm:$0xff]
        %v267 = vld [vmem:[%s122 + $0x3a0] sm:$0xff]
        %v268 = vld [vmem:[%s122 + $0x3a8] sm:$0xff]
        %v269 = vld [vmem:[%s122 + $0x3b0] sm:$0xff]
        %v270 = vld [vmem:[%s122 + $0x3b8] sm:$0xff]
        %v271 = vld [vmem:[%s122 + $0x3c0] sm:$0xff]
        %v272 = vld [vmem:[%s122 + $0x3c8] sm:$0xff]
        %v273 = vld [vmem:[%s122 + $0x3d0] sm:$0xff]
        %v274 = vld [vmem:[%s122 + $0x3d8] sm:$0xff]
        %v275 = vld [vmem:[%s122 + $0x3e0] sm:$0xff]
        %v276 = vld [vmem:[%s122 + $0x3e8] sm:$0xff]
        %v277 = vld [vmem:[%s122 + $0x3f0] sm:$0xff]
        %v278 = vld [vmem:[%s122 + $0x3f8] sm:$0xff]
        %v279 = vld [vmem:[%s122 + $0x400] sm:$0xff]
        %v280 = vld [vmem:[%s122 + $0x408] sm:$0xff]
        %v281 = vld [vmem:[%s122 + $0x410] sm:$0xff]
        %v282 = vld [vmem:[%s122 + $0x418] sm:$0xff]
        %v283 = vld [vmem:[%s122 + $0x420] sm:$0xff]
        %v284 = vld [vmem:[%s122 + $0x428] sm:$0xff]
        %v285 = vld [vmem:[%s122 + $0x430] sm:$0xff]
        %v286 = vld [vmem:[%s122 + $0x438] sm:$0xff]
        %v287 = vld [vmem:[%s122 + $0x440] sm:$0xff]
        %v288 = vld [vmem:[%s122 + $0x448] sm:$0xff]
        %v289 = vld [vmem:[%s122 + $0x450] sm:$0xff]
        %v290 = vld [vmem:[%s122 + $0x458] sm:$0xff]
        %v291 = vld [vmem:[%s122 + $0x460] sm:$0xff]
        %v292 = vld [vmem:[%s122 + $0x468] sm:$0xff]
        %v293 = vld [vmem:[%s122 + $0x470] sm:$0xff]
        %v294 = vld [vmem:[%s122 + $0x478] sm:$0xff]
        %v295 = vld [vmem:[%s122 + $0x480] sm:$0xff]
        %v296 = vld [vmem:[%s122 + $0x488] sm:$0xff]
        %v297 = vld [vmem:[%s122 + $0x490] sm:$0xff]
        %v298 = vld [vmem:[%s122 + $0x498] sm:$0xff]
        %v299 = vld [vmem:[%s122 + $0x4a0] sm:$0xff]
        %v300 = vld [vmem:[%s122 + $0x4a8] sm:$0xff]
        %v301 = vld [vmem:[%s122 + $0x4b0] sm:$0xff]
        %v302 = vld [vmem:[%s122 + $0x4b8] sm:$0xff]
        %v303 = vld [vmem:[%s122 + $0x4c0] sm:$0xff]
        %v304 = vld [vmem:[%s122 + $0x4c8] sm:$0xff]
        %v305 = vld [vmem:[%s122 + $0x4d0] sm:$0xff]
        %v306 = vld [vmem:[%s122 + $0x4d8] sm:$0xff]
        %v307 = vld [vmem:[%s122 + $0x4e0] sm:$0xff]
        %v308 = vld [vmem:[%s122 + $0x4e8] sm:$0xff]
        %v309 = vld [vmem:[%s122 + $0x4f0] sm:$0xff]
        %v310 = vld [vmem:[%s122 + $0x4f8] sm:$0xff]
        %v311 = vld [vmem:[%s122 + $0x500] sm:$0xff]
        %v312 = vld [vmem:[%s122 + $0x508] sm:$0xff]
        %v313 = vld [vmem:[%s122 + $0x510] sm:$0xff]
        %v314 = vld [vmem:[%s122 + $0x518] sm:$0xff]
        %v315 = vld [vmem:[%s122 + $0x520] sm:$0xff]
        %v316 = vld [vmem:[%s122 + $0x528] sm:$0xff]
        %v317 = vld [vmem:[%s122 + $0x530] sm:$0xff]
        %v318 = vld [vmem:[%s122 + $0x538] sm:$0xff]
        %v319 = vld [vmem:[%s122 + $0x540] sm:$0xff]
        %v320 = vld [vmem:[%s122 + $0x548] sm:$0xff]
        %v321 = vld [vmem:[%s122 + $0x550] sm:$0xff]
        %v322 = vld [vmem:[%s122 + $0x558] sm:$0xff]
        %v323 = vld [vmem:[%s122 + $0x560] sm:$0xff]
        %v324 = vld [vmem:[%s122 + $0x568] sm:$0xff]
        %v325 = vld [vmem:[%s122 + $0x570] sm:$0xff]
        %v326 = vld [vmem:[%s122 + $0x578] sm:$0xff]
        %v327 = vld [vmem:[%s122 + $0x580] sm:$0xff]
        %v328 = vld [vmem:[%s122 + $0x588] sm:$0xff]
        %v329 = vld [vmem:[%s122 + $0x590] sm:$0xff]
        %v330 = vld [vmem:[%s122 + $0x598] sm:$0xff]
        %v331 = vld [vmem:[%s122 + $0x5a0] sm:$0xff]
        %v332 = vld [vmem:[%s122 + $0x5a8] sm:$0xff]
        %v333 = vld [vmem:[%s122 + $0x5b0] sm:$0xff]
        %v334 = vld [vmem:[%s122 + $0x5b8] sm:$0xff]
        %v335 = vld [vmem:[%s122 + $0x5c0] sm:$0xff]
        %v336 = vld [vmem:[%s122 + $0x5c8] sm:$0xff]
        %v337 = vld [vmem:[%s122 + $0x5d0] sm:$0xff]
        %v338 = vld [vmem:[%s122 + $0x5d8] sm:$0xff]
        %v339 = vld [vmem:[%s122 + $0x5e0] sm:$0xff]
        %v340 = vld [vmem:[%s122 + $0x5e8] sm:$0xff]
        %v341 = vld [vmem:[%s122 + $0x5f0] sm:$0xff]
        %v342 = vld [vmem:[%s122 + $0x5f8] sm:$0xff]
        %v343 = vld [vmem:[%s122 + $0x600] sm:$0xff]
        %v344 = vld [vmem:[%s122 + $0x608] sm:$0xff]
        %v345 = vld [vmem:[%s122 + $0x610] sm:$0xff]
        %v346 = vld [vmem:[%s122 + $0x618] sm:$0xff]
        %v347 = vld [vmem:[%s122 + $0x620] sm:$0xff]
        %v348 = vld [vmem:[%s122 + $0x628] sm:$0xff]
        %v349 = vld [vmem:[%s122 + $0x630] sm:$0xff]
        %v350 = vld [vmem:[%s122 + $0x638] sm:$0xff]
        %v351 = vld [vmem:[%s122 + $0x640] sm:$0xff]
        %v352 = vld [vmem:[%s122 + $0x648] sm:$0xff]
        %v353 = vld [vmem:[%s122 + $0x650] sm:$0xff]
        %v354 = vld [vmem:[%s122 + $0x658] sm:$0xff]
        %v355 = vld [vmem:[%s122 + $0x660] sm:$0xff]
        %v356 = vld [vmem:[%s122 + $0x668] sm:$0xff]
        %v357 = vld [vmem:[%s122 + $0x670] sm:$0xff]
        %v358 = vld [vmem:[%s122 + $0x678] sm:$0xff]
        %v359 = vld [vmem:[%s122 + $0x680] sm:$0xff]
        %v360 = vld [vmem:[%s122 + $0x688] sm:$0xff]
        %v361 = vld [vmem:[%s122 + $0x690] sm:$0xff]
        %v362 = vld [vmem:[%s122 + $0x698] sm:$0xff]
        %v363 = vld [vmem:[%s122 + $0x6a0] sm:$0xff]
        %v364 = vld [vmem:[%s122 + $0x6a8] sm:$0xff]
        %v365 = vld [vmem:[%s122 + $0x6b0] sm:$0xff]
        %v366 = vld [vmem:[%s122 + $0x6b8] sm:$0xff]
        %v367 = vld [vmem:[%s122 + $0x6c0] sm:$0xff]
        %v368 = vld [vmem:[%s122 + $0x6c8] sm:$0xff]
        %v369 = vld [vmem:[%s122 + $0x6d0] sm:$0xff]
        %v370 = vld [vmem:[%s122 + $0x6d8] sm:$0xff]
        %v371 = vld [vmem:[%s122 + $0x6e0] sm:$0xff]
        %v372 = vld [vmem:[%s122 + $0x6e8] sm:$0xff]
        %v373 = vld [vmem:[%s122 + $0x6f0] sm:$0xff]
        %v374 = vld [vmem:[%s122 + $0x6f8] sm:$0xff]
        %v375 = vld [vmem:[%s122 + $0x700] sm:$0xff]
        %v376 = vld [vmem:[%s122 + $0x708] sm:$0xff]
        %v377 = vld [vmem:[%s122 + $0x710] sm:$0xff]
        %v378 = vld [vmem:[%s122 + $0x718] sm:$0xff]
        %v379 = vld [vmem:[%s122 + $0x720] sm:$0xff]
        %v380 = vld [vmem:[%s122 + $0x728] sm:$0xff]
        %v381 = vld [vmem:[%s122 + $0x730] sm:$0xff]
        %v382 = vld [vmem:[%s122 + $0x738] sm:$0xff]
        %v383 = vld [vmem:[%s122 + $0x740] sm:$0xff]
        %v384 = vld [vmem:[%s122 + $0x748] sm:$0xff]
        %v385 = vld [vmem:[%s122 + $0x750] sm:$0xff]
        %v386 = vld [vmem:[%s122 + $0x758] sm:$0xff]
        %v387 = vld [vmem:[%s122 + $0x760] sm:$0xff]
        %v388 = vld [vmem:[%s122 + $0x768] sm:$0xff]
        %v389 = vld [vmem:[%s122 + $0x770] sm:$0xff]
        %v390 = vld [vmem:[%s122 + $0x778] sm:$0xff]
        %v391 = vld [vmem:[%s122 + $0x780] sm:$0xff]
        %v392 = vld [vmem:[%s122 + $0x788] sm:$0xff]
        %v393 = vld [vmem:[%s122 + $0x790] sm:$0xff]
        %v394 = vld [vmem:[%s122 + $0x798] sm:$0xff]
        %v395 = vld [vmem:[%s122 + $0x7a0] sm:$0xff]
        %v396 = vld [vmem:[%s122 + $0x7a8] sm:$0xff]
        %v397 = vld [vmem:[%s122 + $0x7b0] sm:$0xff]
        %v398 = vld [vmem:[%s122 + $0x7b8] sm:$0xff]
        %v399 = vld [vmem:[%s122 + $0x7c0] sm:$0xff]
        %v400 = vld [vmem:[%s122 + $0x7c8] sm:$0xff]
        %v401 = vld [vmem:[%s122 + $0x7d0] sm:$0xff]
        %v402 = vld [vmem:[%s122 + $0x7d8] sm:$0xff]
        %v403 = vld [vmem:[%s122 + $0x7e0] sm:$0xff]
        %v404 = vld [vmem:[%s122 + $0x7e8] sm:$0xff]
        %v405 = vld [vmem:[%s122 + $0x7f0] sm:$0xff]
        %v406 = vld [vmem:[%s122 + $0x7f8] sm:$0xff]
        %v407 = vld [vmem:[%s122 + $0x800] sm:$0xff]
        %v408 = vld [vmem:[%s122 + $0x808] sm:$0xff]
        %v409 = vld [vmem:[%s122 + $0x810] sm:$0xff]
        %v410 = vld [vmem:[%s122 + $0x818] sm:$0xff]
        %v411 = vld [vmem:[%s122 + $0x820] sm:$0xff]
        %v412 = vld [vmem:[%s122 + $0x828] sm:$0xff]
        %v413 = vld [vmem:[%s122 + $0x830] sm:$0xff]
        %v414 = vld [vmem:[%s122 + $0x838] sm:$0xff]
        %v415 = vld [vmem:[%s122 + $0x840] sm:$0xff]
        %v416 = vld [vmem:[%s122 + $0x848] sm:$0xff]
        %v417 = vld [vmem:[%s122 + $0x850] sm:$0xff]
        %v418 = vld [vmem:[%s122 + $0x858] sm:$0xff]
        %v419 = vld [vmem:[%s122 + $0x860] sm:$0xff]
        %v420 = vld [vmem:[%s122 + $0x868] sm:$0xff]
        %v421 = vld [vmem:[%s122 + $0x870] sm:$0xff]
        %v422 = vld [vmem:[%s122 + $0x878] sm:$0xff]
        %v423 = vld [vmem:[%s122 + $0x880] sm:$0xff]
        %v424 = vld [vmem:[%s122 + $0x888] sm:$0xff]
        %v425 = vld [vmem:[%s122 + $0x890] sm:$0xff]
        %v426 = vld [vmem:[%s122 + $0x898] sm:$0xff]
        %v427 = vld [vmem:[%s122 + $0x8a0] sm:$0xff]
        %v428 = vld [vmem:[%s122 + $0x8a8] sm:$0xff]
        %v429 = vld [vmem:[%s122 + $0x8b0] sm:$0xff]
        %v430 = vld [vmem:[%s122 + $0x8b8] sm:$0xff]
        %v431 = vld [vmem:[%s122 + $0x8c0] sm:$0xff]
        %v432 = vld [vmem:[%s122 + $0x8c8] sm:$0xff]
        %v433 = vld [vmem:[%s122 + $0x8d0] sm:$0xff]
        %v434 = vld [vmem:[%s122 + $0x8d8] sm:$0xff]
        %v435 = vld [vmem:[%s122 + $0x8e0] sm:$0xff]
        %v436 = vld [vmem:[%s122 + $0x8e8] sm:$0xff]
        %v437 = vld [vmem:[%s122 + $0x8f0] sm:$0xff]
        %v438 = vld [vmem:[%s122 + $0x8f8] sm:$0xff]
        %v439 = vld [vmem:[%s122 + $0x900] sm:$0xff]
        %v440 = vld [vmem:[%s122 + $0x908] sm:$0xff]
        %v441 = vld [vmem:[%s122 + $0x910] sm:$0xff]
        %v442 = vld [vmem:[%s122 + $0x918] sm:$0xff]
        %v443 = vld [vmem:[%s122 + $0x920] sm:$0xff]
        %v444 = vld [vmem:[%s122 + $0x928] sm:$0xff]
        %v445 = vld [vmem:[%s122 + $0x930] sm:$0xff]
        %v446 = vld [vmem:[%s122 + $0x938] sm:$0xff]
        %v447 = vld [vmem:[%s122 + $0x940] sm:$0xff]
        %v448 = vld [vmem:[%s122 + $0x948] sm:$0xff]
        %v449 = vld [vmem:[%s122 + $0x950] sm:$0xff]
        %v450 = vld [vmem:[%s122 + $0x958] sm:$0xff]
        %v451 = vld [vmem:[%s122 + $0x960] sm:$0xff]
        %v452 = vld [vmem:[%s122 + $0x968] sm:$0xff]
        %v453 = vld [vmem:[%s122 + $0x970] sm:$0xff]
        %v454 = vld [vmem:[%s122 + $0x978] sm:$0xff]
        %v455 = vld [vmem:[%s122 + $0x980] sm:$0xff]
        %v456 = vld [vmem:[%s122 + $0x988] sm:$0xff]
        %v457 = vld [vmem:[%s122 + $0x990] sm:$0xff]
        %v458 = vld [vmem:[%s122 + $0x998] sm:$0xff]
        %v459 = vld [vmem:[%s122 + $0x9a0] sm:$0xff]
        %v460 = vld [vmem:[%s122 + $0x9a8] sm:$0xff]
        %v461 = vld [vmem:[%s122 + $0x9b0] sm:$0xff]
        %v462 = vld [vmem:[%s122 + $0x9b8] sm:$0xff]
        %v463 = vld [vmem:[%s122 + $0x9c0] sm:$0xff]
        %v464 = vadd.f32 %v151, 1.0
        %v465 = vadd.f32 %v152, 1.0
        %v466 = vadd.f32 %v153, 1.0
        %v467 = vadd.f32 %v154, 1.0
        %v468 = vadd.f32 %v155, 1.0
        %v469 = vadd.f32 %v156, 1.0
        %v470 = vadd.f32 %v157, 1.0
        %v471 = vadd.f32 %v158, 1.0
        %v472 = vadd.f32 %v159, 1.0
        %v473 = vadd.f32 %v160, 1.0
        %v474 = vadd.f32 %v161, 1.0
        %v475 = vadd.f32 %v162, 1.0
        %v476 = vadd.f32 %v163, 1.0
        %v477 = vadd.f32 %v164, 1.0
        %v478 = vadd.f32 %v165, 1.0
        %v479 = vadd.f32 %v166, 1.0
        %v480 = vadd.f32 %v167, 1.0
        %v481 = vadd.f32 %v168, 1.0
        %v482 = vadd.f32 %v169, 1.0
        %v483 = vadd.f32 %v170, 1.0
        %v484 = vadd.f32 %v171, 1.0
        %v485 = vadd.f32 %v172, 1.0
        %v486 = vadd.f32 %v173, 1.0
        %v487 = vadd.f32 %v174, 1.0
        %v488 = vadd.f32 %v175, 1.0
        %v489 = vadd.f32 %v176, 1.0
        %v490 = vadd.f32 %v177, 1.0
        %v491 = vadd.f32 %v178, 1.0
        %v492 = vadd.f32 %v179, 1.0
        %v493 = vadd.f32 %v180, 1.0
        %v494 = vadd.f32 %v181, 1.0
        %v495 = vadd.f32 %v182, 1.0
        %v496 = vadd.f32 %v183, 1.0
        %v497 = vadd.f32 %v184, 1.0
        %v498 = vadd.f32 %v185, 1.0
        %v499 = vadd.f32 %v186, 1.0
        %v500 = vadd.f32 %v187, 1.0
        %v501 = vadd.f32 %v188, 1.0
        %v502 = vadd.f32 %v189, 1.0
        %v503 = vadd.f32 %v190, 1.0
        %v504 = vadd.f32 %v191, 1.0
        %v505 = vadd.f32 %v192, 1.0
        %v506 = vadd.f32 %v193, 1.0
        %v507 = vadd.f32 %v194, 1.0
        %v508 = vadd.f32 %v195, 1.0
        %v509 = vadd.f32 %v196, 1.0
        %v510 = vadd.f32 %v197, 1.0
        %v511 = vadd.f32 %v198, 1.0
        %v512 = vadd.f32 %v199, 1.0
        %v513 = vadd.f32 %v200, 1.0
        %v514 = vadd.f32 %v201, 1.0
        %v515 = vadd.f32 %v202, 1.0
        %v516 = vadd.f32 %v203, 1.0
        %v517 = vadd.f32 %v204, 1.0
        %v518 = vadd.f32 %v205, 1.0
        %v519 = vadd.f32 %v206, 1.0
        %v520 = vadd.f32 %v207, 1.0
        %v521 = vadd.f32 %v208, 1.0
        %v522 = vadd.f32 %v209, 1.0
        %v523 = vadd.f32 %v210, 1.0
        %v524 = vadd.f32 %v211, 1.0
        %v525 = vadd.f32 %v212, 1.0
        %v526 = vadd.f32 %v213, 1.0
        %v527 = vadd.f32 %v214, 1.0
        %v528 = vadd.f32 %v215, 1.0
        %v529 = vadd.f32 %v216, 1.0
        %v530 = vadd.f32 %v217, 1.0
        %v531 = vadd.f32 %v218, 1.0
        %v532 = vadd.f32 %v219, 1.0
        %v533 = vadd.f32 %v220, 1.0
        %v534 = vadd.f32 %v221, 1.0
        %v535 = vadd.f32 %v222, 1.0
        %v536 = vadd.f32 %v223, 1.0
        %v537 = vadd.f32 %v224, 1.0
        %v538 = vadd.f32 %v225, 1.0
        %v539 = vadd.f32 %v226, 1.0
        %v540 = vadd.f32 %v227, 1.0
        %v541 = vadd.f32 %v228, 1.0
        %v542 = vadd.f32 %v229, 1.0
        %v543 = vadd.f32 %v230, 1.0
        %v544 = vadd.f32 %v231, 1.0
        %v545 = vadd.f32 %v232, 1.0
        %v546 = vadd.f32 %v233, 1.0
        %v547 = vadd.f32 %v234, 1.0
        %v548 = vadd.f32 %v235, 1.0
        %v549 = vadd.f32 %v236, 1.0
        %v550 = vadd.f32 %v237, 1.0
        %v551 = vadd.f32 %v238, 1.0
        %v552 = vadd.f32 %v239, 1.0
        %v553 = vadd.f32 %v240, 1.0
        %v554 = vadd.f32 %v241, 1.0
        %v555 = vadd.f32 %v242, 1.0
        %v556 = vadd.f32 %v243, 1.0
        %v557 = vadd.f32 %v244, 1.0
        %v558 = vadd.f32 %v245, 1.0
        %v559 = vadd.f32 %v246, 1.0
        %v560 = vadd.f32 %v247, 1.0
        %v561 = vadd.f32 %v248, 1.0
        %v562 = vadd.f32 %v249, 1.0
        %v563 = vadd.f32 %v250, 1.0
        %v564 = vadd.f32 %v251, 1.0
        %v565 = vadd.f32 %v252, 1.0
        %v566 = vadd.f32 %v253, 1.0
        %v567 = vadd.f32 %v254, 1.0
        %v568 = vadd.f32 %v255, 1.0
        %v569 = vadd.f32 %v256, 1.0
        %v570 = vadd.f32 %v257, 1.0
        %v571 = vadd.f32 %v258, 1.0
        %v572 = vadd.f32 %v259, 1.0
        %v573 = vadd.f32 %v260, 1.0
        %v574 = vadd.f32 %v261, 1.0
        %v575 = vadd.f32 %v262, 1.0
        %v576 = vadd.f32 %v263, 1.0
        %v577 = vadd.f32 %v264, 1.0
        %v578 = vadd.f32 %v265, 1.0
        %v579 = vadd.f32 %v266, 1.0
        %v580 = vadd.f32 %v267, 1.0
        %v581 = vadd.f32 %v268, 1.0
        %v582 = vadd.f32 %v269, 1.0
        %v583 = vadd.f32 %v270, 1.0
        %v584 = vadd.f32 %v271, 1.0
        %v585 = vadd.f32 %v272, 1.0
        %v586 = vadd.f32 %v273, 1.0
        %v587 = vadd.f32 %v274, 1.0
        %v588 = vadd.f32 %v275, 1.0
        %v589 = vadd.f32 %v276, 1.0
        %v590 = vadd.f32 %v277, 1.0
        %v591 = vadd.f32 %v278, 1.0
        %v592 = vadd.f32 %v279, 1.0
        %v593 = vadd.f32 %v280, 1.0
        %v594 = vadd.f32 %v281, 1.0
        %v595 = vadd.f32 %v282, 1.0
        %v596 = vadd.f32 %v283, 1.0
        %v597 = vadd.f32 %v284, 1.0
        %v598 = vadd.f32 %v285, 1.0
        %v599 = vadd.f32 %v286, 1.0
        %v600 = vadd.f32 %v287, 1.0
        %v601 = vadd.f32 %v288, 1.0
        %v602 = vadd.f32 %v289, 1.0
        %v603 = vadd.f32 %v290, 1.0
        %v604 = vadd.f32 %v291, 1.0
        %v605 = vadd.f32 %v292, 1.0
        %v606 = vadd.f32 %v293, 1.0
        %v607 = vadd.f32 %v294, 1.0
        %v608 = vadd.f32 %v295, 1.0
        %v609 = vadd.f32 %v296, 1.0
        %v610 = vadd.f32 %v297, 1.0
        %v611 = vadd.f32 %v298, 1.0
        %v612 = vadd.f32 %v299, 1.0
        %v613 = vadd.f32 %v300, 1.0
        %v614 = vadd.f32 %v301, 1.0
        %v615 = vadd.f32 %v302, 1.0
        %v616 = vadd.f32 %v303, 1.0
        %v617 = vadd.f32 %v304, 1.0
        %v618 = vadd.f32 %v305, 1.0
        %v619 = vadd.f32 %v306, 1.0
        %v620 = vadd.f32 %v307, 1.0
        %v621 = vadd.f32 %v308, 1.0
        %v622 = vadd.f32 %v309, 1.0
        %v623 = vadd.f32 %v310, 1.0
        %v624 = vadd.f32 %v311, 1.0
        %v625 = vadd.f32 %v312, 1.0
        %v626 = vadd.f32 %v313, 1.0
        %v627 = vadd.f32 %v314, 1.0
        %v628 = vadd.f32 %v315, 1.0
        %v629 = vadd.f32 %v316, 1.0
        %v630 = vadd.f32 %v317, 1.0
        %v631 = vadd.f32 %v318, 1.0
        %v632 = vadd.f32 %v319, 1.0
        %v633 = vadd.f32 %v320, 1.0
        %v634 = vadd.f32 %v321, 1.0
        %v635 = vadd.f32 %v322, 1.0
        %v636 = vadd.f32 %v323, 1.0
        %v637 = vadd.f32 %v324, 1.0
        %v638 = vadd.f32 %v325, 1.0
        %v639 = vadd.f32 %v326, 1.0
        %v640 = vadd.f32 %v327, 1.0
        %v641 = vadd.f32 %v328, 1.0
        %v642 = vadd.f32 %v329, 1.0
        %v643 = vadd.f32 %v330, 1.0
        %v644 = vadd.f32 %v331, 1.0
        %v645 = vadd.f32 %v332, 1.0
        %v646 = vadd.f32 %v333, 1.0
        %v647 = vadd.f32 %v334, 1.0
        %v648 = vadd.f32 %v335, 1.0
        %v649 = vadd.f32 %v336, 1.0
        %v650 = vadd.f32 %v337, 1.0
        %v651 = vadd.f32 %v338, 1.0
        %v652 = vadd.f32 %v339, 1.0
        %v653 = vadd.f32 %v340, 1.0
        %v654 = vadd.f32 %v341, 1.0
        %v655 = vadd.f32 %v342, 1.0
        %v656 = vadd.f32 %v343, 1.0
        %v657 = vadd.f32 %v344, 1.0
        %v658 = vadd.f32 %v345, 1.0
        %v659 = vadd.f32 %v346, 1.0
        %v660 = vadd.f32 %v347, 1.0
        %v661 = vadd.f32 %v348, 1.0
        %v662 = vadd.f32 %v349, 1.0
        %v663 = vadd.f32 %v350, 1.0
        %v664 = vadd.f32 %v351, 1.0
        %v665 = vadd.f32 %v352, 1.0
        %v666 = vadd.f32 %v353, 1.0
        %v667 = vadd.f32 %v354, 1.0
        %v668 = vadd.f32 %v355, 1.0
        %v669 = vadd.f32 %v356, 1.0
        %v670 = vadd.f32 %v357, 1.0
        %v671 = vadd.f32 %v358, 1.0
        %v672 = vadd.f32 %v359, 1.0
        %v673 = vadd.f32 %v360, 1.0
        %v674 = vadd.f32 %v361, 1.0
        %v675 = vadd.f32 %v362, 1.0
        %v676 = vadd.f32 %v363, 1.0
        %v677 = vadd.f32 %v364, 1.0
        %v678 = vadd.f32 %v365, 1.0
        %v679 = vadd.f32 %v366, 1.0
        %v680 = vadd.f32 %v367, 1.0
        %v681 = vadd.f32 %v368, 1.0
        %v682 = vadd.f32 %v369, 1.0
        %v683 = vadd.f32 %v370, 1.0
        %v684 = vadd.f32 %v371, 1.0
        %v685 = vadd.f32 %v372, 1.0
        %v686 = vadd.f32 %v373, 1.0
        %v687 = vadd.f32 %v374, 1.0
        %v688 = vadd.f32 %v375, 1.0
        %v689 = vadd.f32 %v376, 1.0
        %v690 = vadd.f32 %v377, 1.0
        %v691 = vadd.f32 %v378, 1.0
        %v692 = vadd.f32 %v379, 1.0
        %v693 = vadd.f32 %v380, 1.0
        %v694 = vadd.f32 %v381, 1.0
        %v695 = vadd.f32 %v382, 1.0
        %v696 = vadd.f32 %v383, 1.0
        %v697 = vadd.f32 %v384, 1.0
        %v698 = vadd.f32 %v385, 1.0
        %v699 = vadd.f32 %v386, 1.0
        %v700 = vadd.f32 %v387, 1.0
        %v701 = vadd.f32 %v388, 1.0
        %v702 = vadd.f32 %v389, 1.0
        %v703 = vadd.f32 %v390, 1.0
        %v704 = vadd.f32 %v391, 1.0
        %v705 = vadd.f32 %v392, 1.0
        %v706 = vadd.f32 %v393, 1.0
        %v707 = vadd.f32 %v394, 1.0
        %v708 = vadd.f32 %v395, 1.0
        %v709 = vadd.f32 %v396, 1.0
        %v710 = vadd.f32 %v397, 1.0
        %v711 = vadd.f32 %v398, 1.0
        %v712 = vadd.f32 %v399, 1.0
        %v713 = vadd.f32 %v400, 1.0
        %v714 = vadd.f32 %v401, 1.0
        %v715 = vadd.f32 %v402, 1.0
        %v716 = vadd.f32 %v403, 1.0
        %v717 = vadd.f32 %v404, 1.0
        %v718 = vadd.f32 %v405, 1.0
        %v719 = vadd.f32 %v406, 1.0
        %v720 = vadd.f32 %v407, 1.0
        %v721 = vadd.f32 %v408, 1.0
        %v722 = vadd.f32 %v409, 1.0
        %v723 = vadd.f32 %v410, 1.0
        %v724 = vadd.f32 %v411, 1.0
        %v725 = vadd.f32 %v412, 1.0
        %v726 = vadd.f32 %v413, 1.0
        %v727 = vadd.f32 %v414, 1.0
        %v728 = vadd.f32 %v415, 1.0
        %v729 = vadd.f32 %v416, 1.0
        %v730 = vadd.f32 %v417, 1.0
        %v731 = vadd.f32 %v418, 1.0
        %v732 = vadd.f32 %v419, 1.0
        %v733 = vadd.f32 %v420, 1.0
        %v734 = vadd.f32 %v421, 1.0
        %v735 = vadd.f32 %v422, 1.0
        %v736 = vadd.f32 %v423, 1.0
        %v737 = vadd.f32 %v424, 1.0
        %v738 = vadd.f32 %v425, 1.0
        %v739 = vadd.f32 %v426, 1.0
        %v740 = vadd.f32 %v427, 1.0
        %v741 = vadd.f32 %v428, 1.0
        %v742 = vadd.f32 %v429, 1.0
        %v743 = vadd.f32 %v430, 1.0
        %v744 = vadd.f32 %v431, 1.0
        %v745 = vadd.f32 %v432, 1.0
        %v746 = vadd.f32 %v433, 1.0
        %v747 = vadd.f32 %v434, 1.0
        %v748 = vadd.f32 %v435, 1.0
        %v749 = vadd.f32 %v436, 1.0
        %v750 = vadd.f32 %v437, 1.0
        %v751 = vadd.f32 %v438, 1.0
        %v752 = vadd.f32 %v439, 1.0
        %v753 = vadd.f32 %v440, 1.0
        %v754 = vadd.f32 %v441, 1.0
        %v755 = vadd.f32 %v442, 1.0
        %v756 = vadd.f32 %v443, 1.0
        %v757 = vadd.f32 %v444, 1.0
        %v758 = vadd.f32 %v445, 1.0
        %v759 = vadd.f32 %v446, 1.0
        %v760 = vadd.f32 %v447, 1.0
        %v761 = vadd.f32 %v448, 1.0
        %v762 = vadd.f32 %v449, 1.0
        %v763 = vadd.f32 %v450, 1.0
        %v764 = vadd.f32 %v451, 1.0
        %v765 = vadd.f32 %v452, 1.0
        %v766 = vadd.f32 %v453, 1.0
        %v767 = vadd.f32 %v454, 1.0
        %v768 = vadd.f32 %v455, 1.0
        %v769 = vadd.f32 %v456, 1.0
        %v770 = vadd.f32 %v457, 1.0
        %v771 = vadd.f32 %v458, 1.0
        %v772 = vadd.f32 %v459, 1.0
        %v773 = vadd.f32 %v460, 1.0
        %v774 = vadd.f32 %v461, 1.0
        %v775 = vadd.f32 %v462, 1.0
        %v776 = vadd.f32 %v463, 1.0
        %777 = vst [vmem:[%s140] sm:$0xff] %v464
        %778 = vst [vmem:[%s140 + $0x8] sm:$0xff] %v465
        %779 = vst [vmem:[%s140 + $0x10] sm:$0xff] %v466
        %780 = vst [vmem:[%s140 + $0x18] sm:$0xff] %v467
        %781 = vst [vmem:[%s140 + $0x20] sm:$0xff] %v468
        %782 = vst [vmem:[%s140 + $0x28] sm:$0xff] %v469
        %783 = vst [vmem:[%s140 + $0x30] sm:$0xff] %v470
        %784 = vst [vmem:[%s140 + $0x38] sm:$0xff] %v471
        %785 = vst [vmem:[%s140 + $0x40] sm:$0xff] %v472
        %786 = vst [vmem:[%s140 + $0x48] sm:$0xff] %v473
        %787 = vst [vmem:[%s140 + $0x50] sm:$0xff] %v474
        %788 = vst [vmem:[%s140 + $0x58] sm:$0xff] %v475
        %789 = vst [vmem:[%s140 + $0x60] sm:$0xff] %v476
        %790 = vst [vmem:[%s140 + $0x68] sm:$0xff] %v477
        %791 = vst [vmem:[%s140 + $0x70] sm:$0xff] %v478
        %792 = vst [vmem:[%s140 + $0x78] sm:$0xff] %v479
        %793 = vst [vmem:[%s140 + $0x80] sm:$0xff] %v480
        %794 = vst [vmem:[%s140 + $0x88] sm:$0xff] %v481
        %795 = vst [vmem:[%s140 + $0x90] sm:$0xff] %v482
        %796 = vst [vmem:[%s140 + $0x98] sm:$0xff] %v483
        %797 = vst [vmem:[%s140 + $0xa0] sm:$0xff] %v484
        %798 = vst [vmem:[%s140 + $0xa8] sm:$0xff] %v485
        %799 = vst [vmem:[%s140 + $0xb0] sm:$0xff] %v486
        %800 = vst [vmem:[%s140 + $0xb8] sm:$0xff] %v487
        %801 = vst [vmem:[%s140 + $0xc0] sm:$0xff] %v488
        %802 = vst [vmem:[%s140 + $0xc8] sm:$0xff] %v489
        %803 = vst [vmem:[%s140 + $0xd0] sm:$0xff] %v490
        %804 = vst [vmem:[%s140 + $0xd8] sm:$0xff] %v491
        %805 = vst [vmem:[%s140 + $0xe0] sm:$0xff] %v492
        %806 = vst [vmem:[%s140 + $0xe8] sm:$0xff] %v493
        %807 = vst [vmem:[%s140 + $0xf0] sm:$0xff] %v494
        %808 = vst [vmem:[%s140 + $0xf8] sm:$0xff] %v495
        %809 = vst [vmem:[%s140 + $0x100] sm:$0xff] %v496
        %810 = vst [vmem:[%s140 + $0x108] sm:$0xff] %v497
        %811 = vst [vmem:[%s140 + $0x110] sm:$0xff] %v498
        %812 = vst [vmem:[%s140 + $0x118] sm:$0xff] %v499
        %813 = vst [vmem:[%s140 + $0x120] sm:$0xff] %v500
        %814 = vst [vmem:[%s140 + $0x128] sm:$0xff] %v501
        %815 = vst [vmem:[%s140 + $0x130] sm:$0xff] %v502
        %816 = vst [vmem:[%s140 + $0x138] sm:$0xff] %v503
        %817 = vst [vmem:[%s140 + $0x140] sm:$0xff] %v504
        %818 = vst [vmem:[%s140 + $0x148] sm:$0xff] %v505
        %819 = vst [vmem:[%s140 + $0x150] sm:$0xff] %v506
        %820 = vst [vmem:[%s140 + $0x158] sm:$0xff] %v507
        %821 = vst [vmem:[%s140 + $0x160] sm:$0xff] %v508
        %822 = vst [vmem:[%s140 + $0x168] sm:$0xff] %v509
        %823 = vst [vmem:[%s140 + $0x170] sm:$0xff] %v510
        %824 = vst [vmem:[%s140 + $0x178] sm:$0xff] %v511
        %825 = vst [vmem:[%s140 + $0x180] sm:$0xff] %v512
        %826 = vst [vmem:[%s140 + $0x188] sm:$0xff] %v513
        %827 = vst [vmem:[%s140 + $0x190] sm:$0xff] %v514
        %828 = vst [vmem:[%s140 + $0x198] sm:$0xff] %v515
        %829 = vst [vmem:[%s140 + $0x1a0] sm:$0xff] %v516
        %830 = vst [vmem:[%s140 + $0x1a8] sm:$0xff] %v517
        %831 = vst [vmem:[%s140 + $0x1b0] sm:$0xff] %v518
        %832 = vst [vmem:[%s140 + $0x1b8] sm:$0xff] %v519
        %833 = vst [vmem:[%s140 + $0x1c0] sm:$0xff] %v520
        %834 = vst [vmem:[%s140 + $0x1c8] sm:$0xff] %v521
        %835 = vst [vmem:[%s140 + $0x1d0] sm:$0xff] %v522
        %836 = vst [vmem:[%s140 + $0x1d8] sm:$0xff] %v523
        %837 = vst [vmem:[%s140 + $0x1e0] sm:$0xff] %v524
        %838 = vst [vmem:[%s140 + $0x1e8] sm:$0xff] %v525
        %839 = vst [vmem:[%s140 + $0x1f0] sm:$0xff] %v526
        %840 = vst [vmem:[%s140 + $0x1f8] sm:$0xff] %v527
        %841 = vst [vmem:[%s140 + $0x200] sm:$0xff] %v528
        %842 = vst [vmem:[%s140 + $0x208] sm:$0xff] %v529
        %843 = vst [vmem:[%s140 + $0x210] sm:$0xff] %v530
        %844 = vst [vmem:[%s140 + $0x218] sm:$0xff] %v531
        %845 = vst [vmem:[%s140 + $0x220] sm:$0xff] %v532
        %846 = vst [vmem:[%s140 + $0x228] sm:$0xff] %v533
        %847 = vst [vmem:[%s140 + $0x230] sm:$0xff] %v534
        %848 = vst [vmem:[%s140 + $0x238] sm:$0xff] %v535
        %849 = vst [vmem:[%s140 + $0x240] sm:$0xff] %v536
        %850 = vst [vmem:[%s140 + $0x248] sm:$0xff] %v537
        %851 = vst [vmem:[%s140 + $0x250] sm:$0xff] %v538
        %852 = vst [vmem:[%s140 + $0x258] sm:$0xff] %v539
        %853 = vst [vmem:[%s140 + $0x260] sm:$0xff] %v540
        %854 = vst [vmem:[%s140 + $0x268] sm:$0xff] %v541
        %855 = vst [vmem:[%s140 + $0x270] sm:$0xff] %v542
        %856 = vst [vmem:[%s140 + $0x278] sm:$0xff] %v543
        %857 = vst [vmem:[%s140 + $0x280] sm:$0xff] %v544
        %858 = vst [vmem:[%s140 + $0x288] sm:$0xff] %v545
        %859 = vst [vmem:[%s140 + $0x290] sm:$0xff] %v546
        %860 = vst [vmem:[%s140 + $0x298] sm:$0xff] %v547
        %861 = vst [vmem:[%s140 + $0x2a0] sm:$0xff] %v548
        %862 = vst [vmem:[%s140 + $0x2a8] sm:$0xff] %v549
        %863 = vst [vmem:[%s140 + $0x2b0] sm:$0xff] %v550
        %864 = vst [vmem:[%s140 + $0x2b8] sm:$0xff] %v551
        %865 = vst [vmem:[%s140 + $0x2c0] sm:$0xff] %v552
        %866 = vst [vmem:[%s140 + $0x2c8] sm:$0xff] %v553
        %867 = vst [vmem:[%s140 + $0x2d0] sm:$0xff] %v554
        %868 = vst [vmem:[%s140 + $0x2d8] sm:$0xff] %v555
        %869 = vst [vmem:[%s140 + $0x2e0] sm:$0xff] %v556
        %870 = vst [vmem:[%s140 + $0x2e8] sm:$0xff] %v557
        %871 = vst [vmem:[%s140 + $0x2f0] sm:$0xff] %v558
        %872 = vst [vmem:[%s140 + $0x2f8] sm:$0xff] %v559
        %873 = vst [vmem:[%s140 + $0x300] sm:$0xff] %v560
        %874 = vst [vmem:[%s140 + $0x308] sm:$0xff] %v561
        %875 = vst [vmem:[%s140 + $0x310] sm:$0xff] %v562
        %876 = vst [vmem:[%s140 + $0x318] sm:$0xff] %v563
        %877 = vst [vmem:[%s140 + $0x320] sm:$0xff] %v564
        %878 = vst [vmem:[%s140 + $0x328] sm:$0xff] %v565
        %879 = vst [vmem:[%s140 + $0x330] sm:$0xff] %v566
        %880 = vst [vmem:[%s140 + $0x338] sm:$0xff] %v567
        %881 = vst [vmem:[%s140 + $0x340] sm:$0xff] %v568
        %882 = vst [vmem:[%s140 + $0x348] sm:$0xff] %v569
        %883 = vst [vmem:[%s140 + $0x350] sm:$0xff] %v570
        %884 = vst [vmem:[%s140 + $0x358] sm:$0xff] %v571
        %885 = vst [vmem:[%s140 + $0x360] sm:$0xff] %v572
        %886 = vst [vmem:[%s140 + $0x368] sm:$0xff] %v573
        %887 = vst [vmem:[%s140 + $0x370] sm:$0xff] %v574
        %888 = vst [vmem:[%s140 + $0x378] sm:$0xff] %v575
        %889 = vst [vmem:[%s140 + $0x380] sm:$0xff] %v576
        %890 = vst [vmem:[%s140 + $0x388] sm:$0xff] %v577
        %891 = vst [vmem:[%s140 + $0x390] sm:$0xff] %v578
        %892 = vst [vmem:[%s140 + $0x398] sm:$0xff] %v579
        %893 = vst [vmem:[%s140 + $0x3a0] sm:$0xff] %v580
        %894 = vst [vmem:[%s140 + $0x3a8] sm:$0xff] %v581
        %895 = vst [vmem:[%s140 + $0x3b0] sm:$0xff] %v582
        %896 = vst [vmem:[%s140 + $0x3b8] sm:$0xff] %v583
        %897 = vst [vmem:[%s140 + $0x3c0] sm:$0xff] %v584
        %898 = vst [vmem:[%s140 + $0x3c8] sm:$0xff] %v585
        %899 = vst [vmem:[%s140 + $0x3d0] sm:$0xff] %v586
        %900 = vst [vmem:[%s140 + $0x3d8] sm:$0xff] %v587
        %901 = vst [vmem:[%s140 + $0x3e0] sm:$0xff] %v588
        %902 = vst [vmem:[%s140 + $0x3e8] sm:$0xff] %v589
        %903 = vst [vmem:[%s140 + $0x3f0] sm:$0xff] %v590
        %904 = vst [vmem:[%s140 + $0x3f8] sm:$0xff] %v591
        %905 = vst [vmem:[%s140 + $0x400] sm:$0xff] %v592
        %906 = vst [vmem:[%s140 + $0x408] sm:$0xff] %v593
        %907 = vst [vmem:[%s140 + $0x410] sm:$0xff] %v594
        %908 = vst [vmem:[%s140 + $0x418] sm:$0xff] %v595
        %909 = vst [vmem:[%s140 + $0x420] sm:$0xff] %v596
        %910 = vst [vmem:[%s140 + $0x428] sm:$0xff] %v597
        %911 = vst [vmem:[%s140 + $0x430] sm:$0xff] %v598
        %912 = vst [vmem:[%s140 + $0x438] sm:$0xff] %v599
        %913 = vst [vmem:[%s140 + $0x440] sm:$0xff] %v600
        %914 = vst [vmem:[%s140 + $0x448] sm:$0xff] %v601
        %915 = vst [vmem:[%s140 + $0x450] sm:$0xff] %v602
        %916 = vst [vmem:[%s140 + $0x458] sm:$0xff] %v603
        %917 = vst [vmem:[%s140 + $0x460] sm:$0xff] %v604
        %918 = vst [vmem:[%s140 + $0x468] sm:$0xff] %v605
        %919 = vst [vmem:[%s140 + $0x470] sm:$0xff] %v606
        %920 = vst [vmem:[%s140 + $0x478] sm:$0xff] %v607
        %921 = vst [vmem:[%s140 + $0x480] sm:$0xff] %v608
        %922 = vst [vmem:[%s140 + $0x488] sm:$0xff] %v609
        %923 = vst [vmem:[%s140 + $0x490] sm:$0xff] %v610
        %924 = vst [vmem:[%s140 + $0x498] sm:$0xff] %v611
        %925 = vst [vmem:[%s140 + $0x4a0] sm:$0xff] %v612
        %926 = vst [vmem:[%s140 + $0x4a8] sm:$0xff] %v613
        %927 = vst [vmem:[%s140 + $0x4b0] sm:$0xff] %v614
        %928 = vst [vmem:[%s140 + $0x4b8] sm:$0xff] %v615
        %929 = vst [vmem:[%s140 + $0x4c0] sm:$0xff] %v616
        %930 = vst [vmem:[%s140 + $0x4c8] sm:$0xff] %v617
        %931 = vst [vmem:[%s140 + $0x4d0] sm:$0xff] %v618
        %932 = vst [vmem:[%s140 + $0x4d8] sm:$0xff] %v619
        %933 = vst [vmem:[%s140 + $0x4e0] sm:$0xff] %v620
        %934 = vst [vmem:[%s140 + $0x4e8] sm:$0xff] %v621
        %935 = vst [vmem:[%s140 + $0x4f0] sm:$0xff] %v622
        %936 = vst [vmem:[%s140 + $0x4f8] sm:$0xff] %v623
        %937 = vst [vmem:[%s140 + $0x500] sm:$0xff] %v624
        %938 = vst [vmem:[%s140 + $0x508] sm:$0xff] %v625
        %939 = vst [vmem:[%s140 + $0x510] sm:$0xff] %v626
        %940 = vst [vmem:[%s140 + $0x518] sm:$0xff] %v627
        %941 = vst [vmem:[%s140 + $0x520] sm:$0xff] %v628
        %942 = vst [vmem:[%s140 + $0x528] sm:$0xff] %v629
        %943 = vst [vmem:[%s140 + $0x530] sm:$0xff] %v630
        %944 = vst [vmem:[%s140 + $0x538] sm:$0xff] %v631
        %945 = vst [vmem:[%s140 + $0x540] sm:$0xff] %v632
        %946 = vst [vmem:[%s140 + $0x548] sm:$0xff] %v633
        %947 = vst [vmem:[%s140 + $0x550] sm:$0xff] %v634
        %948 = vst [vmem:[%s140 + $0x558] sm:$0xff] %v635
        %949 = vst [vmem:[%s140 + $0x560] sm:$0xff] %v636
        %950 = vst [vmem:[%s140 + $0x568] sm:$0xff] %v637
        %951 = vst [vmem:[%s140 + $0x570] sm:$0xff] %v638
        %952 = vst [vmem:[%s140 + $0x578] sm:$0xff] %v639
        %953 = vst [vmem:[%s140 + $0x580] sm:$0xff] %v640
        %954 = vst [vmem:[%s140 + $0x588] sm:$0xff] %v641
        %955 = vst [vmem:[%s140 + $0x590] sm:$0xff] %v642
        %956 = vst [vmem:[%s140 + $0x598] sm:$0xff] %v643
        %957 = vst [vmem:[%s140 + $0x5a0] sm:$0xff] %v644
        %958 = vst [vmem:[%s140 + $0x5a8] sm:$0xff] %v645
        %959 = vst [vmem:[%s140 + $0x5b0] sm:$0xff] %v646
        %960 = vst [vmem:[%s140 + $0x5b8] sm:$0xff] %v647
        %961 = vst [vmem:[%s140 + $0x5c0] sm:$0xff] %v648
        %962 = vst [vmem:[%s140 + $0x5c8] sm:$0xff] %v649
        %963 = vst [vmem:[%s140 + $0x5d0] sm:$0xff] %v650
        %964 = vst [vmem:[%s140 + $0x5d8] sm:$0xff] %v651
        %965 = vst [vmem:[%s140 + $0x5e0] sm:$0xff] %v652
        %966 = vst [vmem:[%s140 + $0x5e8] sm:$0xff] %v653
        %967 = vst [vmem:[%s140 + $0x5f0] sm:$0xff] %v654
        %968 = vst [vmem:[%s140 + $0x5f8] sm:$0xff] %v655
        %969 = vst [vmem:[%s140 + $0x600] sm:$0xff] %v656
        %970 = vst [vmem:[%s140 + $0x608] sm:$0xff] %v657
        %971 = vst [vmem:[%s140 + $0x610] sm:$0xff] %v658
        %972 = vst [vmem:[%s140 + $0x618] sm:$0xff] %v659
        %973 = vst [vmem:[%s140 + $0x620] sm:$0xff] %v660
        %974 = vst [vmem:[%s140 + $0x628] sm:$0xff] %v661
        %975 = vst [vmem:[%s140 + $0x630] sm:$0xff] %v662
        %976 = vst [vmem:[%s140 + $0x638] sm:$0xff] %v663
        %977 = vst [vmem:[%s140 + $0x640] sm:$0xff] %v664
        %978 = vst [vmem:[%s140 + $0x648] sm:$0xff] %v665
        %979 = vst [vmem:[%s140 + $0x650] sm:$0xff] %v666
        %980 = vst [vmem:[%s140 + $0x658] sm:$0xff] %v667
        %981 = vst [vmem:[%s140 + $0x660] sm:$0xff] %v668
        %982 = vst [vmem:[%s140 + $0x668] sm:$0xff] %v669
        %983 = vst [vmem:[%s140 + $0x670] sm:$0xff] %v670
        %984 = vst [vmem:[%s140 + $0x678] sm:$0xff] %v671
        %985 = vst [vmem:[%s140 + $0x680] sm:$0xff] %v672
        %986 = vst [vmem:[%s140 + $0x688] sm:$0xff] %v673
        %987 = vst [vmem:[%s140 + $0x690] sm:$0xff] %v674
        %988 = vst [vmem:[%s140 + $0x698] sm:$0xff] %v675
        %989 = vst [vmem:[%s140 + $0x6a0] sm:$0xff] %v676
        %990 = vst [vmem:[%s140 + $0x6a8] sm:$0xff] %v677
        %991 = vst [vmem:[%s140 + $0x6b0] sm:$0xff] %v678
        %992 = vst [vmem:[%s140 + $0x6b8] sm:$0xff] %v679
        %993 = vst [vmem:[%s140 + $0x6c0] sm:$0xff] %v680
        %994 = vst [vmem:[%s140 + $0x6c8] sm:$0xff] %v681
        %995 = vst [vmem:[%s140 + $0x6d0] sm:$0xff] %v682
        %996 = vst [vmem:[%s140 + $0x6d8] sm:$0xff] %v683
        %997 = vst [vmem:[%s140 + $0x6e0] sm:$0xff] %v684
        %998 = vst [vmem:[%s140 + $0x6e8] sm:$0xff] %v685
        %999 = vst [vmem:[%s140 + $0x6f0] sm:$0xff] %v686
        %1000 = vst [vmem:[%s140 + $0x6f8] sm:$0xff] %v687
        %1001 = vst [vmem:[%s140 + $0x700] sm:$0xff] %v688
        %1002 = vst [vmem:[%s140 + $0x708] sm:$0xff] %v689
        %1003 = vst [vmem:[%s140 + $0x710] sm:$0xff] %v690
        %1004 = vst [vmem:[%s140 + $0x718] sm:$0xff] %v691
        %1005 = vst [vmem:[%s140 + $0x720] sm:$0xff] %v692
        %1006 = vst [vmem:[%s140 + $0x728] sm:$0xff] %v693
        %1007 = vst [vmem:[%s140 + $0x730] sm:$0xff] %v694
        %1008 = vst [vmem:[%s140 + $0x738] sm:$0xff] %v695
        %1009 = vst [vmem:[%s140 + $0x740] sm:$0xff] %v696
        %1010 = vst [vmem:[%s140 + $0x748] sm:$0xff] %v697
        %1011 = vst [vmem:[%s140 + $0x750] sm:$0xff] %v698
        %1012 = vst [vmem:[%s140 + $0x758] sm:$0xff] %v699
        %1013 = vst [vmem:[%s140 + $0x760] sm:$0xff] %v700
        %1014 = vst [vmem:[%s140 + $0x768] sm:$0xff] %v701
        %1015 = vst [vmem:[%s140 + $0x770] sm:$0xff] %v702
        %1016 = vst [vmem:[%s140 + $0x778] sm:$0xff] %v703
        %1017 = vst [vmem:[%s140 + $0x780] sm:$0xff] %v704
        %1018 = vst [vmem:[%s140 + $0x788] sm:$0xff] %v705
        %1019 = vst [vmem:[%s140 + $0x790] sm:$0xff] %v706
        %1020 = vst [vmem:[%s140 + $0x798] sm:$0xff] %v707
        %1021 = vst [vmem:[%s140 + $0x7a0] sm:$0xff] %v708
        %1022 = vst [vmem:[%s140 + $0x7a8] sm:$0xff] %v709
        %1023 = vst [vmem:[%s140 + $0x7b0] sm:$0xff] %v710
        %1024 = vst [vmem:[%s140 + $0x7b8] sm:$0xff] %v711
        %1025 = vst [vmem:[%s140 + $0x7c0] sm:$0xff] %v712
        %1026 = vst [vmem:[%s140 + $0x7c8] sm:$0xff] %v713
        %1027 = vst [vmem:[%s140 + $0x7d0] sm:$0xff] %v714
        %1028 = vst [vmem:[%s140 + $0x7d8] sm:$0xff] %v715
        %1029 = vst [vmem:[%s140 + $0x7e0] sm:$0xff] %v716
        %1030 = vst [vmem:[%s140 + $0x7e8] sm:$0xff] %v717
        %1031 = vst [vmem:[%s140 + $0x7f0] sm:$0xff] %v718
        %1032 = vst [vmem:[%s140 + $0x7f8] sm:$0xff] %v719
        %1033 = vst [vmem:[%s140 + $0x800] sm:$0xff] %v720
        %1034 = vst [vmem:[%s140 + $0x808] sm:$0xff] %v721
        %1035 = vst [vmem:[%s140 + $0x810] sm:$0xff] %v722
        %1036 = vst [vmem:[%s140 + $0x818] sm:$0xff] %v723
        %1037 = vst [vmem:[%s140 + $0x820] sm:$0xff] %v724
        %1038 = vst [vmem:[%s140 + $0x828] sm:$0xff] %v725
        %1039 = vst [vmem:[%s140 + $0x830] sm:$0xff] %v726
        %1040 = vst [vmem:[%s140 + $0x838] sm:$0xff] %v727
        %1041 = vst [vmem:[%s140 + $0x840] sm:$0xff] %v728
        %1042 = vst [vmem:[%s140 + $0x848] sm:$0xff] %v729
        %1043 = vst [vmem:[%s140 + $0x850] sm:$0xff] %v730
        %1044 = vst [vmem:[%s140 + $0x858] sm:$0xff] %v731
        %1045 = vst [vmem:[%s140 + $0x860] sm:$0xff] %v732
        %1046 = vst [vmem:[%s140 + $0x868] sm:$0xff] %v733
        %1047 = vst [vmem:[%s140 + $0x870] sm:$0xff] %v734
        %1048 = vst [vmem:[%s140 + $0x878] sm:$0xff] %v735
        %1049 = vst [vmem:[%s140 + $0x880] sm:$0xff] %v736
        %1050 = vst [vmem:[%s140 + $0x888] sm:$0xff] %v737
        %1051 = vst [vmem:[%s140 + $0x890] sm:$0xff] %v738
        %1052 = vst [vmem:[%s140 + $0x898] sm:$0xff] %v739
        %1053 = vst [vmem:[%s140 + $0x8a0] sm:$0xff] %v740
        %1054 = vst [vmem:[%s140 + $0x8a8] sm:$0xff] %v741
        %1055 = vst [vmem:[%s140 + $0x8b0] sm:$0xff] %v742
        %1056 = vst [vmem:[%s140 + $0x8b8] sm:$0xff] %v743
        %1057 = vst [vmem:[%s140 + $0x8c0] sm:$0xff] %v744
        %1058 = vst [vmem:[%s140 + $0x8c8] sm:$0xff] %v745
        %1059 = vst [vmem:[%s140 + $0x8d0] sm:$0xff] %v746
        %1060 = vst [vmem:[%s140 + $0x8d8] sm:$0xff] %v747
        %1061 = vst [vmem:[%s140 + $0x8e0] sm:$0xff] %v748
        %1062 = vst [vmem:[%s140 + $0x8e8] sm:$0xff] %v749
        %1063 = vst [vmem:[%s140 + $0x8f0] sm:$0xff] %v750
        %1064 = vst [vmem:[%s140 + $0x8f8] sm:$0xff] %v751
        %1065 = vst [vmem:[%s140 + $0x900] sm:$0xff] %v752
        %1066 = vst [vmem:[%s140 + $0x908] sm:$0xff] %v753
        %1067 = vst [vmem:[%s140 + $0x910] sm:$0xff] %v754
        %1068 = vst [vmem:[%s140 + $0x918] sm:$0xff] %v755
        %1069 = vst [vmem:[%s140 + $0x920] sm:$0xff] %v756
        %1070 = vst [vmem:[%s140 + $0x928] sm:$0xff] %v757
        %1071 = vst [vmem:[%s140 + $0x930] sm:$0xff] %v758
        %1072 = vst [vmem:[%s140 + $0x938] sm:$0xff] %v759
        %1073 = vst [vmem:[%s140 + $0x940] sm:$0xff] %v760
        %1074 = vst [vmem:[%s140 + $0x948] sm:$0xff] %v761
        %1075 = vst [vmem:[%s140 + $0x950] sm:$0xff] %v762
        %1076 = vst [vmem:[%s140 + $0x958] sm:$0xff] %v763
        %1077 = vst [vmem:[%s140 + $0x960] sm:$0xff] %v764
        %1078 = vst [vmem:[%s140 + $0x968] sm:$0xff] %v765
        %1079 = vst [vmem:[%s140 + $0x970] sm:$0xff] %v766
        %1080 = vst [vmem:[%s140 + $0x978] sm:$0xff] %v767
        %1081 = vst [vmem:[%s140 + $0x980] sm:$0xff] %v768
        %1082 = vst [vmem:[%s140 + $0x988] sm:$0xff] %v769
        %1083 = vst [vmem:[%s140 + $0x990] sm:$0xff] %v770
        %1084 = vst [vmem:[%s140 + $0x998] sm:$0xff] %v771
        %1085 = vst [vmem:[%s140 + $0x9a0] sm:$0xff] %v772
        %1086 = vst [vmem:[%s140 + $0x9a8] sm:$0xff] %v773
        %1087 = vst [vmem:[%s140 + $0x9b0] sm:$0xff] %v774
        %1088 = vst [vmem:[%s140 + $0x9b8] sm:$0xff] %v775
        %1089 = vst [vmem:[%s140 + $0x9c0] sm:$0xff] %v776
        %s1090 = sand.u32 %s52, 1
        %s1091 = scalar_lea.sflag [#allocation4], %s1090
        %s1092 = sand.u32 %s52, 1
        %s1093 = smul.addr %s1092, 2504
        %s1094 = scalar_lea.vmem [#allocation5], %s1093
        // Predicated region
        $region29: #{tpu_custom_call.1} parent=23 // pred_check
          %p1095 = pneg %p62
        $region30: #{tpu_custom_call.1} parent=23 // pred_check_branch
          %1097 = sbr.rel (%p1095) target = $region32
        $region31: #{tpu_custom_call.1} parent=23 // pred_region
          %s1098 = smul.u32 313, %s18
          %s1099 = ssub.s32 625, %s1098
          %p1100 = scmp.lt.s32.totalorder %s1099, 313
          %s1101 = scalar_select %p1100, %s1099, 313
          %s1102 = smul.u32 128, %s1101
          %s1104 = ssub.s32 40064, %s1102
          %1105 = vsyncadd %s1091, %s1104
          %p1106 = scmp.ne.s32.totalorder 0, %s1102
          %s1107 = smul.addr %s1098, 128
          %s1108 = scalar_lea.hbm %s1, %s1107
          %s1109 = smul.u32 8, %s1101
          %s1110 = sshll.u32 %s1094, 4
          %s1111 = int_to_ptr.vmem [resolvable:$true] %s1110
          %s1112 = sshll.u32 %s1109, 4
          %1116 = dma.vmem_to_hbm [thread:$0]  (%p1106), %s1111, %s1112, %s1108, %s1091, 128, 128, 8
        $region32: #{tpu_custom_call.1} parent=23 // pred_fallthru
          _
      $region24: #{tpu_custom_call.1} parent=5 // pred_fallthru
        _
      %p1117 = scmp.le.s32.totalorder 2, %s13
      // Predicated region
      $region33: #{tpu_custom_call.1} parent=5 // pred_check
        %p1118 = pneg %p1117
      $region34: #{tpu_custom_call.1} parent=5 // pred_check_branch
        %1120 = sbr.rel (%p1118) target = $region36
      $region35: #{tpu_custom_call.1} parent=5 // pred_region
        %s1121 = ssub.s32 %s13, 2
        // Predicated region
        $region37: #{tpu_custom_call.1} parent=35 // pred_check
          %p1122 = pneg %p68
        $region38: #{tpu_custom_call.1} parent=35 // pred_check_branch
          %1124 = sbr.rel (%p1122) target = $region40
        $region39: #{tpu_custom_call.1} parent=35 // pred_region
          %s1125 = sand.u32 %s53, 1
          %s1126 = scalar_lea.sflag [#allocation4], %s1125
          %s1127 = sand.u32 %s53, 1
          %s1128 = smul.addr %s1127, 2504
          %s1129 = scalar_lea.vmem [#allocation5], %s1128
          %1130 = dma.done %s1126, 40064
        $region40: #{tpu_custom_call.1} parent=35 // pred_fallthru
          _
      $region36: #{tpu_custom_call.1} parent=5 // pred_fallthru
        _
    $region6: #{tpu_custom_call.1} parent=1 // loop_footer
      %s17 = sadd.s32 1, %s13
    $region7: #{tpu_custom_call.1} parent=1 // loop_footer_branch
      %12 = sbr.rel target = $region3
    $region8: #{tpu_custom_call.1} parent=1 // loop_exit
      _
    %1131 = vsyncpa [#allocation3], 1
    %s1132 = scalar_lea.sflag [#allocation3], 1
    %1133 = vsyncpa %s1132, 1
    %1134 = vsyncpa [#allocation4], 1
    %s1135 = scalar_lea.sflag [#allocation4], 1
    %1136 = vsyncpa %s1135, 1

</llo_original>
